<compile_context>
chip_gen: v5e
topology: v5e:2x2
jax: 0.10.0
libtpu: 0.0.40
codegen_flags: <defaults>
</compile_context>

<pallas_src>
import functools

import jax
import jax.numpy as jnp
from jax import lax
from jax.experimental import pallas as pl
from jax.experimental.pallas import tpu as pltpu


def _round_up(x, m):
    return ((x + m - 1) // m) * m


def _sublane_multiple(dtype):
    # minimal sublane tile: 8 rows f32, 16 rows bf16, 32 rows int8/fp8
    itemsize = jnp.dtype(dtype).itemsize
    return max(8, 32 // itemsize)


# --------------------------------------------------------------------------
# pos=None fast path: contiguous rows 0..seq_len-1  ->  tiled copy * scale
# --------------------------------------------------------------------------
def _copy_scale_kernel(emb_ref, out_ref, *, scale):
    out_ref[...] = (emb_ref[...] * scale).astype(out_ref.dtype)


def _pos_none_path(emb_weight, seq_len, scale, rows_cap=None):
    max_seq_len, dim = emb_weight.shape
    dtype = emb_weight.dtype
    sub = _sublane_multiple(dtype)
    itemsize = jnp.dtype(dtype).itemsize

    # ~4 MiB streaming blocks: large enough to sit at the HBM roofline,
    # small enough that 2x input + 2x output buffers stay well inside VMEM.
    budget_rows = max(sub, ((4 << 20) // (dim * itemsize)) // sub * sub)
    rows = min(_round_up(seq_len, sub), budget_rows)
    if rows_cap is not None:
        rows = min(rows, _round_up(rows_cap, sub))

    block_bytes = rows * dim * itemsize
    # v5e's scoped-VMEM default is 16 MiB; set the limit explicitly so the
    # larger blocks never trip it (4 double-buffered blocks + slack).
    vmem_limit = int(min(56 << 20, max(32 << 20, 4 * block_bytes + (2 << 20))))

    grid = (pl.cdiv(seq_len, rows),)
    return pl.pallas_call(
        functools.partial(_copy_scale_kernel, scale=scale),
        grid_spec=pltpu.PrefetchScalarGridSpec(
            num_scalar_prefetch=0,
            grid=grid,
            in_specs=[pl.BlockSpec((rows, dim), lambda i: (i, 0))],
            out_specs=pl.BlockSpec((rows, dim), lambda i: (i, 0)),
        ),
        out_shape=jax.ShapeDtypeStruct((seq_len, dim), dtype),
        compiler_params=pltpu.CompilerParams(
            dimension_semantics=("parallel",),
            vmem_limit_bytes=vmem_limit),
    )(emb_weight)


# --------------------------------------------------------------------------
# explicit-pos, primary path: table resident in VMEM, in-VMEM row gather
# --------------------------------------------------------------------------
def _gather_vmem_kernel(pos_ref, emb_hbm3, out_ref, tbl3, sem, *,
                        scale, rows, out_len, max_seq_len):
    i = pl.program_id(0)

    # Prime: one DMA of the whole table into the persistent VMEM scratch.
    @pl.when(i == 0)
    def _():
        cp = pltpu.make_async_copy(emb_hbm3, tbl3, sem)
        cp.start()
        cp.wait()

    base = i * rows
    sub_iota = lax.broadcasted_iota(jnp.int32, (8, 1), 0)   # hoisted out of loop

    # Static Python loop -> static store offsets in the output block.
    for r in range(rows):
        # Scalar-path clamps: ragged last block reads a valid (ignored) index,
        # and a bad position can never index outside the table.
        j = jnp.minimum(base + r, out_len - 1)
        p = jnp.clip(pos_ref[j], 0, max_seq_len - 1)
        blk = tbl3[p // 8]                                   # (8, dim) dynamic leading-axis load
        row = jnp.sum(jnp.where(sub_iota == (p % 8), blk, 0),
                      axis=0, keepdims=True)                 # (1, dim) select row p%8
        out_ref[pl.ds(r, 1), :] = (row * scale).astype(out_ref.dtype)


# --------------------------------------------------------------------------
# explicit-pos, fallback path (table too big for VMEM): double-buffered
# per-row HBM DMAs, one semaphore + one block-shaped wait per slot
# --------------------------------------------------------------------------
def _gather_hbm_kernel(pos_ref, emb_hbm, out_ref, vbuf, sem, *,
                       scale, rows, out_len, max_seq_len):
    i = pl.program_id(0)
    n = pl.num_programs(0)
    slot = i % 2

    def start_block(step, slot_):
        base = step * rows
        for r in range(rows):
            j = jnp.minimum(base + r, out_len - 1)
            p = jnp.clip(pos_ref[j], 0, max_seq_len - 1)
            pltpu.make_async_copy(
                emb_hbm.at[pl.ds(p, 1), :],
                vbuf.at[slot_, pl.ds(r, 1), :],
                sem.at[slot_],                  # all rows signal one semaphore
            ).start()

    def wait_block(slot_):
        # Single wait: dst byte-count (rows, dim) equals the sum of the `rows`
        # row copies started on sem[slot_].
        pltpu.make_async_copy(
            vbuf.at[1 - slot_], vbuf.at[slot_], sem.at[slot_]).wait()

    # Prime slot 0 on the very first step.
    @pl.when(i == 0)
    def _():
        start_block(0, 0)

    # Prefetch next step's rows into the other slot (overlap with this step).
    @pl.when(i + 1 < n)
    def _():
        start_block(i + 1, 1 - slot)

    wait_block(slot)
    out_ref[...] = (vbuf[slot] * scale).astype(out_ref.dtype)


def _gather_path(emb_weight, pos, scale, rows_cap=None, force_hbm=False):
    max_seq_len, dim = emb_weight.shape
    dtype = emb_weight.dtype
    sub = _sublane_multiple(dtype)
    itemsize = jnp.dtype(dtype).itemsize

    pos = pos.astype(jnp.int32)
    out_len = pos.shape[0]

    table_bytes = max_seq_len * dim * itemsize
    use_vmem_table = (not force_hbm) and table_bytes <= (24 << 20)

    budget_rows = max(sub, ((2 << 20) // (dim * itemsize)) // sub * sub)
    rows = min(128, _round_up(out_len, sub), budget_rows)
    if rows_cap is not None:
        rows = min(rows, _round_up(rows_cap, sub))
    n_blocks = pl.cdiv(out_len, rows)
    out_block_bytes = rows * dim * itemsize

    if use_vmem_table:
        # View the table as (L/8, 8, dim): row gather only needs a dynamic
        # leading-axis read (padding L up to a multiple of 8 if necessary).
        l_pad = _round_up(max_seq_len, 8)
        emb_in = emb_weight
        if l_pad != max_seq_len:
            emb_in = jnp.pad(emb_in, ((0, l_pad - max_seq_len), (0, 0)))
        emb_in = emb_in.reshape(l_pad // 8, 8, dim)

        kernel = functools.partial(
            _gather_vmem_kernel, scale=scale, rows=rows,
            out_len=out_len, max_seq_len=max_seq_len)
        scratch = [pltpu.VMEM((l_pad // 8, 8, dim), dtype),   # resident table
                   pltpu.SemaphoreType.DMA]
        table_scratch_bytes = l_pad * dim * itemsize
        vmem_limit = int(min(
            56 << 20,
            max(32 << 20, table_scratch_bytes + 4 * out_block_bytes + (4 << 20))))
    else:
        emb_in = emb_weight                                    # stays in HBM
        kernel = functools.partial(
            _gather_hbm_kernel, scale=scale, rows=rows,
            out_len=out_len, max_seq_len=max_seq_len)
        scratch = [pltpu.VMEM((2, rows, dim), dtype),          # double buffer
                   pltpu.SemaphoreType.DMA((2,))]
        vmem_limit = int(min(
            56 << 20, max(32 << 20, 6 * out_block_bytes + (2 << 20))))

    return pl.pallas_call(
        kernel,
        grid_spec=pltpu.PrefetchScalarGridSpec(
            num_scalar_prefetch=1,                             # pos -> SMEM
            grid=(n_blocks,),
            in_specs=[pl.BlockSpec(memory_space=pl.ANY)],      # table: raw HBM ref
            out_specs=pl.BlockSpec((rows, dim), lambda i, pos_ref: (i, 0)),
            scratch_shapes=scratch,
        ),
        out_shape=jax.ShapeDtypeStruct((out_len, dim), dtype),
        compiler_params=pltpu.CompilerParams(
            dimension_semantics=("arbitrary",),                # scratch carried
            vmem_limit_bytes=vmem_limit),
    )(pos, emb_in)


# --------------------------------------------------------------------------
# Public wrapper (forward-pass equivalent of the PyTorch module)
# --------------------------------------------------------------------------
def absolute_positional_embedding(x, emb_weight, pos=None, *,
                                  _rows_cap=None, _force_hbm_gather=False):
    """JAX/Pallas equivalent of AbsolutePositionalEmbedding.forward.

    Args:
      x: array of shape (batch, seq_len, ...) — only shape[1] is used.
      emb_weight: (max_seq_len, dim) embedding table (nn.Embedding.weight).
      pos: optional 1-D int array of position indices.

    Returns:
      emb_weight[pos] * dim**-0.5  (shape (seq_len, dim) when pos is None).
    """
    max_seq_len, dim = emb_weight.shape
    seq_len = x.shape[1]
    assert seq_len <= max_seq_len
    scale = dim ** (-0.5)

    if pos is None:
        return _pos_none_path(emb_weight, seq_len, scale, rows_cap=_rows_cap)
    return _gather_path(emb_weight, pos, scale, rows_cap=_rows_cap,
                        force_hbm=_force_hbm_gather)


if __name__ == "__main__":
    key = jax.random.PRNGKey(0)
    k_emb, k_x, k_pos = jax.random.split(key, 3)

    dim, max_seq_len = 128, 96
    batch = 2

    # Deterministic "parameter" init (nn.Embedding weight ~ N(0, 1)).
    emb_weight = jax.random.normal(k_emb, (max_seq_len, dim), dtype=jnp.float32)
    scale = dim ** (-0.5)

    # Case 1: pos=None fast path (single streaming block).
    seq_len = 8
    x = jax.random.normal(k_x, (batch, seq_len, dim), dtype=jnp.float32)
    out = jax.block_until_ready(absolute_positional_embedding(x, emb_weight))
    assert out.shape == (seq_len, dim)
    assert jnp.allclose(out, emb_weight[:seq_len] * scale, atol=1e-6, rtol=1e-6)

    # Case 2: pos=None, seq_len == max_seq_len with a block size that does not
    # divide it (ragged last block hanging over the table edge).
    x2 = jnp.zeros((batch, max_seq_len, dim), dtype=jnp.float32)
    out2 = jax.block_until_ready(
        absolute_positional_embedding(x2, emb_weight, _rows_cap=40))
    assert jnp.allclose(out2, emb_weight * scale, atol=1e-6, rtol=1e-6)

    # Case 3: explicit pos, VMEM-resident table gather, multiple grid steps
    # with a ragged last output block.
    seq_len3 = 40
    x3 = jnp.zeros((batch, seq_len3, dim), dtype=jnp.float32)
    pos3 = jax.random.randint(k_pos, (seq_len3,), 0, max_seq_len,
                              dtype=jnp.int32)
    out3 = jax.block_until_ready(
        absolute_positional_embedding(x3, emb_weight, pos3, _rows_cap=16))
    assert out3.shape == (seq_len3, dim)
    assert jnp.allclose(out3, emb_weight[pos3] * scale, atol=1e-6, rtol=1e-6)

    # Case 4: explicit pos, forced HBM fallback (double-buffered per-row DMAs,
    # single per-slot semaphore wait).
    out4 = jax.block_until_ready(
        absolute_positional_embedding(x3, emb_weight, pos3, _rows_cap=16,
                                      _force_hbm_gather=True))
    assert jnp.allclose(out4, emb_weight[pos3] * scale, atol=1e-6, rtol=1e-6)

    # Case 5: explicit pos, single-step VMEM-resident gather (default rows).
    out5 = jax.block_until_ready(
        absolute_positional_embedding(x3, emb_weight, pos3))
    assert jnp.allclose(out5, emb_weight[pos3] * scale, atol=1e-6, rtol=1e-6)

    print("KERNEL_OK")
</pallas_src>

<mosaic_0001>
module attributes {stable_mosaic.version = 11 : i64} {
  func.func @_copy_scale_kernel(%arg0: i32, %arg1: memref<8x128xf32, #tpu.memory_space<vmem>>, %arg2: memref<8x128xf32, #tpu.memory_space<vmem>>) attributes {dimension_semantics = [#tpu.dimension_semantics<parallel>], iteration_bounds = array<i64: 1>, scalar_prefetch = 0 : i64, scratch_operands = 0 : i64, tpu.core_type = #tpu.core_type<tc>, window_params = [{transform_indices = @transform_0, window_bounds = array<i64: 8, 128>}, {transform_indices = @transform_1, window_bounds = array<i64: 8, 128>}]} {
    %c0 = arith.constant 0 : index
    %c0_0 = arith.constant 0 : index
    %0 = vector.load %arg1[%c0, %c0_0] : memref<8x128xf32, #tpu.memory_space<vmem>>, vector<8x128xf32>
    %cst = arith.constant 0.0883883461 : f32
    %1 = vector.broadcast %cst : f32 to vector<8x128xf32>
    %2 = arith.mulf %0, %1 : vector<8x128xf32>
    %c0_1 = arith.constant 0 : index
    %c0_2 = arith.constant 0 : index
    %3 = vector.load %arg2[%c0_1, %c0_2] : memref<8x128xf32, #tpu.memory_space<vmem>>, vector<8x128xf32>
    tpu.vector_store %arg2[%c0_1, %c0_2], %2 {strides = array<i32>} : memref<8x128xf32, #tpu.memory_space<vmem>>, vector<8x128xf32>,
    return
  }
  func.func @transform_0(%arg0: i32) -> (i32, i32) {
    %c0_i32 = arith.constant 0 : i32
    %c0_i32_0 = arith.constant 0 : i32
    return %arg0, %c0_i32 : i32, i32
  }
  func.func @transform_1(%arg0: i32) -> (i32, i32) {
    %c0_i32 = arith.constant 0 : i32
    %c0_i32_0 = arith.constant 0 : i32
    return %arg0, %c0_i32 : i32, i32
  }
}

</mosaic_0001>

<llo_original>
// kernel: tpu_custom_call.1
$region0: #{tpu_custom_call.1}
  #allocation0 [shape = 'u32[]', space=smem, size = 0x4, offset = 0x4, fixed_abs, tag = 'smem constant byte address 0x4 - core index']
  #allocation1 [shape = 'u32[72,128]{1,0:T(1,128)}', space=vmem, size = 0x9000, scoped, tag = 'internal scratch']
  %s0 = inlined_call_operand.hbm [shape: f32[96,128], index: 0, kind: input, shape index: {}]
  %s1 = inlined_call_operand.hbm [shape: f32[8,128], index: 1, kind: output, shape index: {}]
  %s2 = sld [smem:[#allocation0]]
  $region18: #{tpu_custom_call.1} parent=0
    _
  %s4 = ssub.s32 1, %s2
  %s5 = scalar_select 0, %s4, %s2
  $region1: #{tpu_custom_call.1} parent=0
    #allocation2 [shape = 'u8[4096]{0}', space=vmem, size = 0x1000, scoped, tag = 'input window, operand 0, single buffered']
    #allocation3 [shape = 's32[1]{0}', space=sflag, size = 0x4, scoped, tag = 'scoped memory for tpu_custom_call.1']
    #allocation4 [shape = 's32[1]{0}', space=sflag, size = 0x4, scoped, tag = 'scoped memory for tpu_custom_call.1']
    #allocation5 [shape = 'u8[4096]{0}', space=vmem, size = 0x1000, scoped, tag = 'output window, operand 0, single buffered']
    %6 = vsyncpa [#allocation3], 0
    %7 = vsyncpa [#allocation4], 0
    // Predicated region
    $region2: #{tpu_custom_call.1} parent=1 // pred_check
      _
    $region3: #{tpu_custom_call.1} parent=1 // pred_check_branch
      %9 = sbr.rel (0) target = $region5
    $region4: #{tpu_custom_call.1} parent=1 // pred_region
      %11 = vsyncadd [#allocation3], 0
      %s13 = sshll.u32 %s0, 4
      %s14 = int_to_ptr.hbm [resolvable:$true] %s13
      %s15 = sshll.u32 [#allocation2], 4
      %s16 = int_to_ptr.vmem [resolvable:$true] %s15
      %18 = dma.hbm_to_vmem [thread:$0]  %s14, 128, %s16, [#allocation3]
    $region5: #{tpu_custom_call.1} parent=1 // pred_fallthru
      _
    // Predicated region
    $region6: #{tpu_custom_call.1} parent=1 // pred_check
      _
    $region7: #{tpu_custom_call.1} parent=1 // pred_check_branch
      %20 = sbr.rel (0) target = $region9
    $region8: #{tpu_custom_call.1} parent=1 // pred_region
      %22 = dma.done [#allocation3], 128
    $region9: #{tpu_custom_call.1} parent=1 // pred_fallthru
      _
    %v23 = vld [vmem:[#allocation2] sm:$0xff]
    %v24 = vmul.f32 %v23, 0.088388346
    %25 = vst [vmem:[#allocation5] sm:$0xff] %v24
    // Predicated region
    $region10: #{tpu_custom_call.1} parent=1 // pred_check
      _
    $region11: #{tpu_custom_call.1} parent=1 // pred_check_branch
      %27 = sbr.rel (0) target = $region13
    $region12: #{tpu_custom_call.1} parent=1 // pred_region
      %29 = vsyncadd [#allocation4], 0
      %s31 = sshll.u32 [#allocation5], 4
      %s32 = int_to_ptr.vmem [resolvable:$true] %s31
      %s33 = sshll.u32 %s1, 4
      %s34 = int_to_ptr.hbm [resolvable:$true] %s33
      %36 = dma.vmem_to_hbm [thread:$0]  %s32, 128, %s34, [#allocation4]
    $region13: #{tpu_custom_call.1} parent=1 // pred_fallthru
      _
    // Predicated region
    $region14: #{tpu_custom_call.1} parent=1 // pred_check
      _
    $region15: #{tpu_custom_call.1} parent=1 // pred_check_branch
      %38 = sbr.rel (0) target = $region17
    $region16: #{tpu_custom_call.1} parent=1 // pred_region
      %40 = dma.done [#allocation4], 128
    $region17: #{tpu_custom_call.1} parent=1 // pred_fallthru
      _
    %41 = vsyncpa [#allocation3], 1
    %42 = vsyncpa [#allocation4], 1

</llo_original>
